<compile_context>
chip_gen: v7x
topology: tpu7x:2x2x1
jax: 0.10.0
libtpu: 0.0.40
codegen_flags: <defaults>
</compile_context>

<pallas_src>
import functools

import jax
import jax.numpy as jnp
from jax import lax
from jax.experimental import pallas as pl
from jax.experimental.pallas import tpu as pltpu

BN_EPS = 1e-5
LEAKY_SLOPE = 0.2
LANE = 128
MAX_TM = 2048


def _round_up(x, m):
    return ((x + m - 1) // m) * m


def _vmem_limits():
    """(vmem_limit_bytes, pipelined-tile budget), generation-aware."""
    cap = 64 * 1024 * 1024
    try:
        cap = int(pltpu.get_tpu_info().vmem_capacity_bytes)
    except Exception:
        pass  # interpret mode / unknown target -> conservative default
    limit = max(min(int(cap * 0.75), 96 * 1024 * 1024), 32 * 1024 * 1024)
    return limit, limit // 2


def _pick_k_tiling(ckk, o_pad):
    """Returns (ckk_pad, tk). Tile K only when the weight block would crowd VMEM."""
    if ckk <= 512 or ckk * o_pad * 4 <= 4 * 1024 * 1024:
        ckk_pad = _round_up(ckk, 8)          # sublane-align the weight rows
        return ckk_pad, ckk_pad              # single K step
    best_tk, best_key = 128, None
    for tk in (640, 512, 384, 256, 128):     # lane-dense K tiles
        key = (_round_up(ckk, tk) - ckk, -tk)  # minimise K padding, prefer larger
        if best_key is None or key < best_key:
            best_tk, best_key = tk, key
    return _round_up(ckk, best_tk), best_tk


def _pick_tile_m(m128, tk, o_pad, budget):
    """Largest useful M tile (multiple of 128) under the VMEM budget, chosen
    to minimise padded-row waste (prefers tiles dividing round_up(M, 128))."""
    per_row = 4 * (2 * tk + 3 * o_pad)       # patches x2 + out x2 + acc, f32
    fixed = 8 * tk * o_pad + 64 * o_pad      # weight block x2 + small vectors
    max_tm = max(128, min(MAX_TM,
                          (max(budget - fixed, 0) // per_row) // 128 * 128))
    if m128 <= max_tm:
        return m128
    best_t, best_cost = 128, None
    for t in range(128, max_tm + 1, 128):
        steps = -(-m128 // t)
        cost = steps * t + 64 * steps        # padded rows + ~grid-step overhead
        if best_cost is None or cost < best_cost or (cost == best_cost and t > best_t):
            best_t, best_cost = t, cost
    return best_t


# ----------------------------------------------------------------------------
# Pass 1: K-tiled conv matmul -> per-tile partial channel sum / sum-of-squares.
# ----------------------------------------------------------------------------
def _conv_stats_kernel(p_ref, w_ref, sum_ref, sq_ref, acc_ref):
    kk = pl.program_id(1)

    @pl.when(kk == 0)
    def _init():
        acc_ref[...] = jnp.zeros_like(acc_ref)

    acc_ref[...] += jnp.dot(p_ref[...], w_ref[...],
                            preferred_element_type=jnp.float32)

    @pl.when(kk == pl.num_programs(1) - 1)
    def _finish():
        y = acc_ref[...]
        # Zero-padded rows contribute exactly 0 to both statistics.
        sum_ref[...] = jnp.sum(y, axis=0, keepdims=True)[None]
        sq_ref[...] = jnp.sum(y * y, axis=0, keepdims=True)[None]


# ----------------------------------------------------------------------------
# Pass 2: recompute the matmul, apply folded BN (one FMA) + LeakyReLU(0.2),
# store only the real O channels (no lane padding on HBM).
# ----------------------------------------------------------------------------
def _conv_bn_act_kernel(p_ref, w_ref, scale_ref, shift_ref, out_ref, acc_ref):
    kk = pl.program_id(1)

    @pl.when(kk == 0)
    def _init():
        acc_ref[...] = jnp.zeros_like(acc_ref)

    acc_ref[...] += jnp.dot(p_ref[...], w_ref[...],
                            preferred_element_type=jnp.float32)

    @pl.when(kk == pl.num_programs(1) - 1)
    def _finish():
        z = acc_ref[...] * scale_ref[...] + shift_ref[...]
        z = jnp.where(z >= 0, z, LEAKY_SLOPE * z)
        out_ref[...] = z[:, : out_ref.shape[1]].astype(out_ref.dtype)


@functools.partial(jax.jit, static_argnames=("k", "s", "p"))
def down_forward(x, weight, bias, gamma, beta, *, k, s, p):
    """x: (N, C, H, W) f32; weight: (O, C, k, k); returns (N, O, OH, OW)."""
    del bias  # Cancels exactly under training-mode BatchNorm (batch statistics).

    n, c, h, w = x.shape
    o = weight.shape[0]
    oh = (h + 2 * p - k) // s + 1
    ow = (w + 2 * p - k) // s + 1
    m = n * oh * ow
    ckk = c * k * k

    # im2col via a 0/1-kernel conv (exact at HIGHEST precision), NHWC output so
    # flattened rows are already M = N*OH*OW major; feature order is (c, kh, kw)
    # which matches weight.reshape(o, ckk).
    patches = lax.conv_general_dilated_patches(
        x.astype(jnp.float32), (k, k), (s, s), ((p, p), (p, p)),
        dimension_numbers=("NCHW", "OIHW", "NHWC"),
        precision=lax.Precision.HIGHEST,
    ).reshape(m, ckk)

    o_pad = _round_up(o, LANE)               # MXU N width (VMEM only, never stored)
    vmem_limit, budget = _vmem_limits()
    ckk_pad, tk = _pick_k_tiling(ckk, o_pad)
    grid_k = ckk_pad // tk

    m128 = _round_up(m, 128)
    tm = _pick_tile_m(m128, tk, o_pad, budget)
    m_pad = _round_up(m128, tm)
    grid_m = m_pad // tm

    patches = jnp.pad(patches, ((0, m_pad - m), (0, ckk_pad - ckk)))
    w2d = jnp.pad(weight.reshape(o, ckk).T.astype(jnp.float32),
                  ((0, ckk_pad - ckk), (0, o_pad - o)))           # (CKK_pad, O_pad)

    compiler_params = pltpu.CompilerParams(
        dimension_semantics=("parallel", "arbitrary"),
        vmem_limit_bytes=vmem_limit,
    )

    # ---- Pass 1: per-tile partial channel statistics ------------------------
    psum, psq = pl.pallas_call(
        _conv_stats_kernel,
        out_shape=(
            jax.ShapeDtypeStruct((grid_m, 1, o_pad), jnp.float32),
            jax.ShapeDtypeStruct((grid_m, 1, o_pad), jnp.float32),
        ),
        grid=(grid_m, grid_k),
        in_specs=[
            pl.BlockSpec((tm, tk), lambda i, kk: (i, kk)),
            pl.BlockSpec((tk, o_pad), lambda i, kk: (kk, 0)),
        ],
        out_specs=[
            pl.BlockSpec((1, 1, o_pad), lambda i, kk: (i, 0, 0)),
            pl.BlockSpec((1, 1, o_pad), lambda i, kk: (i, 0, 0)),
        ],
        scratch_shapes=[pltpu.VMEM((tm, o_pad), jnp.float32)],
        compiler_params=compiler_params,
    )(patches, w2d)

    # Tiny (grid_m, 1, O_pad) -> (1, O_pad) reduction; fold BN into one FMA.
    inv_m = 1.0 / float(m)                   # divide by TRUE row count, not m_pad
    csum = jnp.sum(psum, axis=0)             # (1, O_pad)
    csq = jnp.sum(psq, axis=0)               # (1, O_pad)
    mean = csum * inv_m
    var = jnp.maximum(csq * inv_m - mean * mean, 0.0)
    g2d = jnp.pad(gamma.reshape(1, o).astype(jnp.float32), ((0, 0), (0, o_pad - o)))
    b2d = jnp.pad(beta.reshape(1, o).astype(jnp.float32), ((0, 0), (0, o_pad - o)))
    scale = g2d * lax.rsqrt(var + BN_EPS)
    shift = b2d - mean * scale

    # ---- Pass 2: recompute matmul + BN FMA + LeakyReLU, store (M, O) --------
    out2d = pl.pallas_call(
        _conv_bn_act_kernel,
        out_shape=jax.ShapeDtypeStruct((m_pad, o), jnp.float32),
        grid=(grid_m, grid_k),
        in_specs=[
            pl.BlockSpec((tm, tk), lambda i, kk: (i, kk)),
            pl.BlockSpec((tk, o_pad), lambda i, kk: (kk, 0)),
            pl.BlockSpec((1, o_pad), lambda i, kk: (0, 0)),
            pl.BlockSpec((1, o_pad), lambda i, kk: (0, 0)),
        ],
        out_specs=pl.BlockSpec((tm, o), lambda i, kk: (i, 0)),
        scratch_shapes=[pltpu.VMEM((tm, o_pad), jnp.float32)],
        compiler_params=compiler_params,
    )(patches, w2d, scale, shift)

    # (M, O) -> (N, OH, OW, O) -> NCHW (PyTorch layout).
    # TODO(synk): keep chained Down blocks in NHWC to drop this final transpose.
    return jnp.transpose(out2d[:m].reshape(n, oh, ow, o), (0, 3, 1, 2))


def _reference(x, weight, bias, gamma, beta, k, s, p):
    """Pure-JAX reference: conv2d + BN(batch stats) + LeakyReLU, NCHW."""
    y = lax.conv_general_dilated(
        x, weight, window_strides=(s, s), padding=((p, p), (p, p)),
        dimension_numbers=("NCHW", "OIHW", "NCHW"))
    y = y + bias[None, :, None, None]
    mean = jnp.mean(y, axis=(0, 2, 3), keepdims=True)
    var = jnp.mean((y - mean) ** 2, axis=(0, 2, 3), keepdims=True)
    z = (y - mean) * lax.rsqrt(var + BN_EPS)
    z = z * gamma[None, :, None, None] + beta[None, :, None, None]
    return jnp.where(z >= 0, z, LEAKY_SLOPE * z)


if __name__ == "__main__":
    # Down(i=4, o=8, k=3, s=2, p=1), x: (2, 4, 16, 16)
    i_ch, o_ch, k, s, p = 4, 8, 3, 2, 1
    key = jax.random.PRNGKey(0)
    kx, kw, kb, kg, kbe = jax.random.split(key, 5)

    x = jax.random.normal(kx, (2, i_ch, 16, 16), dtype=jnp.float32)
    # Deterministic parameter init (synthetic, not a checkpoint).
    fan_in = i_ch * k * k
    bound = 1.0 / (fan_in ** 0.5)
    weight = jax.random.uniform(kw, (o_ch, i_ch, k, k), jnp.float32, -bound, bound)
    bias = jax.random.uniform(kb, (o_ch,), jnp.float32, -bound, bound)
    gamma = jnp.ones((o_ch,), jnp.float32) + 0.1 * jax.random.normal(kg, (o_ch,))
    beta = 0.1 * jax.random.normal(kbe, (o_ch,))

    out = down_forward(x, weight, bias, gamma, beta, k=k, s=s, p=p)
    out = jax.block_until_ready(out)

    ref = _reference(x, weight, bias, gamma, beta, k, s, p)
    assert out.shape == ref.shape == (2, o_ch, 8, 8), out.shape
    assert jnp.allclose(out, ref, atol=1e-4, rtol=1e-4), float(
        jnp.max(jnp.abs(out - ref)))

    print("KERNEL_OK")
</pallas_src>

<mosaic_0001>
module attributes {stable_mosaic.version = 11 : i64} {
  func.func @_conv_bn_act_kernel(%arg0: i32, %arg1: i32, %arg2: memref<128x40xf32, #tpu.memory_space<vmem>>, %arg3: memref<40x128xf32, #tpu.memory_space<vmem>>, %arg4: memref<1x128xf32, #tpu.memory_space<vmem>>, %arg5: memref<1x128xf32, #tpu.memory_space<vmem>>, %arg6: memref<128x8xf32, #tpu.memory_space<vmem>>, %arg7: memref<128x128xf32, #tpu.memory_space<vmem>>) attributes {dimension_semantics = [#tpu.dimension_semantics<parallel>, #tpu.dimension_semantics<arbitrary>], iteration_bounds = array<i64: 1, 1>, scalar_prefetch = 0 : i64, scratch_operands = 1 : i64, tpu.core_type = #tpu.core_type<tc>, window_params = [{transform_indices = @transform_0, window_bounds = array<i64: 128, 40>}, {transform_indices = @transform_1, window_bounds = array<i64: 40, 128>}, {pipeline_mode = #tpu.pipeline_mode<synchronous>, transform_indices = @transform_2, window_bounds = array<i64: 1, 128>}, {pipeline_mode = #tpu.pipeline_mode<synchronous>, transform_indices = @transform_3, window_bounds = array<i64: 1, 128>}, {transform_indices = @transform_4, window_bounds = array<i64: 128, 8>}]} {
    %c0_i32 = arith.constant 0 : i32
    %0 = arith.cmpi eq, %arg1, %c0_i32 : i32
    %1 = arith.extui %0 : i1 to i32
    %c0_i32_0 = arith.constant 0 : i32
    %2 = arith.cmpi ne, %1, %c0_i32_0 : i32
    scf.if %2 {
      %cst_10 = arith.constant 0.000000e+00 : f32
      %12 = vector.broadcast %cst_10 : f32 to vector<128x128xf32>
      %c0_11 = arith.constant 0 : index
      %c0_12 = arith.constant 0 : index
      %13 = vector.load %arg7[%c0_11, %c0_12] : memref<128x128xf32, #tpu.memory_space<vmem>>, vector<128x128xf32>
      tpu.vector_store %arg7[%c0_11, %c0_12], %12 {strides = array<i32>} : memref<128x128xf32, #tpu.memory_space<vmem>>, vector<128x128xf32>,
    } else {
    }
    %c0 = arith.constant 0 : index
    %c0_1 = arith.constant 0 : index
    %3 = vector.load %arg7[%c0, %c0_1] : memref<128x128xf32, #tpu.memory_space<vmem>>, vector<128x128xf32>
    %c0_2 = arith.constant 0 : index
    %c0_3 = arith.constant 0 : index
    %4 = vector.load %arg2[%c0_2, %c0_3] : memref<128x40xf32, #tpu.memory_space<vmem>>, vector<128x40xf32>
    %c0_4 = arith.constant 0 : index
    %c0_5 = arith.constant 0 : index
    %5 = vector.load %arg3[%c0_4, %c0_5] : memref<40x128xf32, #tpu.memory_space<vmem>>, vector<40x128xf32>
    %cst = arith.constant dense<0.000000e+00> : vector<128x128xf32>
    %6 = tpu.matmul %4, %5, %cst {dimension_numbers = #tpu.dot_dimension_numbers<[1], [0], [0], [1], [0, 0, 1, 1], [], []>} : vector<128x40xf32>, vector<40x128xf32>, vector<128x128xf32> -> vector<128x128xf32>
    %7 = arith.addf %3, %6 : vector<128x128xf32>
    %c0_6 = arith.constant 0 : index
    %c0_7 = arith.constant 0 : index
    %8 = vector.load %arg7[%c0_6, %c0_7] : memref<128x128xf32, #tpu.memory_space<vmem>>, vector<128x128xf32>
    tpu.vector_store %arg7[%c0_6, %c0_7], %7 {strides = array<i32>} : memref<128x128xf32, #tpu.memory_space<vmem>>, vector<128x128xf32>,
    %c0_i32_8 = arith.constant 0 : i32
    %9 = arith.cmpi eq, %arg1, %c0_i32_8 : i32
    %10 = arith.extui %9 : i1 to i32
    %c0_i32_9 = arith.constant 0 : i32
    %11 = arith.cmpi ne, %10, %c0_i32_9 : i32
    scf.if %11 {
      %c0_10 = arith.constant 0 : index
      %c0_11 = arith.constant 0 : index
      %12 = vector.load %arg7[%c0_10, %c0_11] : memref<128x128xf32, #tpu.memory_space<vmem>>, vector<128x128xf32>
      %c0_12 = arith.constant 0 : index
      %c0_13 = arith.constant 0 : index
      %13 = vector.load %arg4[%c0_12, %c0_13] : memref<1x128xf32, #tpu.memory_space<vmem>>, vector<1x128xf32>
      %14 = vector.broadcast %13 : vector<1x128xf32> to vector<128x128xf32>
      %15 = arith.mulf %12, %14 : vector<128x128xf32>
      %c0_14 = arith.constant 0 : index
      %c0_15 = arith.constant 0 : index
      %16 = vector.load %arg5[%c0_14, %c0_15] : memref<1x128xf32, #tpu.memory_space<vmem>>, vector<1x128xf32>
      %17 = vector.broadcast %16 : vector<1x128xf32> to vector<128x128xf32>
      %18 = arith.addf %15, %17 : vector<128x128xf32>
      %cst_16 = arith.constant 0.000000e+00 : f32
      %19 = vector.broadcast %cst_16 : f32 to vector<128x128xf32>
      %20 = arith.cmpf oge, %18, %19 : vector<128x128xf32>
      %cst_17 = arith.constant 2.000000e-01 : f32
      %21 = vector.broadcast %cst_17 : f32 to vector<128x128xf32>
      %22 = arith.mulf %21, %18 : vector<128x128xf32>
      %23 = arith.select %20, %18, %22 : vector<128x128xi1>, vector<128x128xf32>
      %24 = vector.extract_strided_slice %23 {offsets = [0, 0], sizes = [128, 8], strides = [1, 1]} : vector<128x128xf32> to vector<128x8xf32>
      %c0_18 = arith.constant 0 : index
      %c0_19 = arith.constant 0 : index
      %25 = vector.load %arg6[%c0_18, %c0_19] : memref<128x8xf32, #tpu.memory_space<vmem>>, vector<128x8xf32>
      tpu.vector_store %arg6[%c0_18, %c0_19], %24 {strides = array<i32>} : memref<128x8xf32, #tpu.memory_space<vmem>>, vector<128x8xf32>,
    } else {
    }
    return
  }
  func.func @transform_0(%arg0: i32, %arg1: i32) -> (i32, i32) {
    %c0_i32 = arith.constant 0 : i32
    return %arg0, %arg1 : i32, i32
  }
  func.func @transform_1(%arg0: i32, %arg1: i32) -> (i32, i32) {
    %c0_i32 = arith.constant 0 : i32
    %c0_i32_0 = arith.constant 0 : i32
    return %arg1, %c0_i32 : i32, i32
  }
  func.func @transform_2(%arg0: i32, %arg1: i32) -> (i32, i32) {
    %c0_i32 = arith.constant 0 : i32
    %c0_i32_0 = arith.constant 0 : i32
    %c0_i32_1 = arith.constant 0 : i32
    return %c0_i32, %c0_i32_0 : i32, i32
  }
  func.func @transform_3(%arg0: i32, %arg1: i32) -> (i32, i32) {
    %c0_i32 = arith.constant 0 : i32
    %c0_i32_0 = arith.constant 0 : i32
    %c0_i32_1 = arith.constant 0 : i32
    return %c0_i32, %c0_i32_0 : i32, i32
  }
  func.func @transform_4(%arg0: i32, %arg1: i32) -> (i32, i32) {
    %c0_i32 = arith.constant 0 : i32
    %c0_i32_0 = arith.constant 0 : i32
    return %arg0, %c0_i32 : i32, i32
  }
}

module attributes {stable_mosaic.version = 11 : i64} {
  func.func @_conv_stats_kernel(%arg0: i32, %arg1: i32, %arg2: memref<128x40xf32, #tpu.memory_space<vmem>>, %arg3: memref<40x128xf32, #tpu.memory_space<vmem>>, %arg4: memref<1x1x128xf32, #tpu.memory_space<vmem>>, %arg5: memref<1x1x128xf32, #tpu.memory_space<vmem>>, %arg6: memref<128x128xf32, #tpu.memory_space<vmem>>) attributes {dimension_semantics = [#tpu.dimension_semantics<parallel>, #tpu.dimension_semantics<arbitrary>], iteration_bounds = array<i64: 1, 1>, scalar_prefetch = 0 : i64, scratch_operands = 1 : i64, tpu.core_type = #tpu.core_type<tc>, window_params = [{transform_indices = @transform_0, window_bounds = array<i64: 128, 40>}, {transform_indices = @transform_1, window_bounds = array<i64: 40, 128>}, {transform_indices = @transform_2, window_bounds = array<i64: 1, 1, 128>}, {transform_indices = @transform_3, window_bounds = array<i64: 1, 1, 128>}]} {
    %c0_i32 = arith.constant 0 : i32
    %0 = arith.cmpi eq, %arg1, %c0_i32 : i32
    %1 = arith.extui %0 : i1 to i32
    %c0_i32_0 = arith.constant 0 : i32
    %2 = arith.cmpi ne, %1, %c0_i32_0 : i32
    scf.if %2 {
      %cst_10 = arith.constant 0.000000e+00 : f32
      %12 = vector.broadcast %cst_10 : f32 to vector<128x128xf32>
      %c0_11 = arith.constant 0 : index
      %c0_12 = arith.constant 0 : index
      %13 = vector.load %arg6[%c0_11, %c0_12] : memref<128x128xf32, #tpu.memory_space<vmem>>, vector<128x128xf32>
      tpu.vector_store %arg6[%c0_11, %c0_12], %12 {strides = array<i32>} : memref<128x128xf32, #tpu.memory_space<vmem>>, vector<128x128xf32>,
    } else {
    }
    %c0 = arith.constant 0 : index
    %c0_1 = arith.constant 0 : index
    %3 = vector.load %arg6[%c0, %c0_1] : memref<128x128xf32, #tpu.memory_space<vmem>>, vector<128x128xf32>
    %c0_2 = arith.constant 0 : index
    %c0_3 = arith.constant 0 : index
    %4 = vector.load %arg2[%c0_2, %c0_3] : memref<128x40xf32, #tpu.memory_space<vmem>>, vector<128x40xf32>
    %c0_4 = arith.constant 0 : index
    %c0_5 = arith.constant 0 : index
    %5 = vector.load %arg3[%c0_4, %c0_5] : memref<40x128xf32, #tpu.memory_space<vmem>>, vector<40x128xf32>
    %cst = arith.constant dense<0.000000e+00> : vector<128x128xf32>
    %6 = tpu.matmul %4, %5, %cst {dimension_numbers = #tpu.dot_dimension_numbers<[1], [0], [0], [1], [0, 0, 1, 1], [], []>} : vector<128x40xf32>, vector<40x128xf32>, vector<128x128xf32> -> vector<128x128xf32>
    %7 = arith.addf %3, %6 : vector<128x128xf32>
    %c0_6 = arith.constant 0 : index
    %c0_7 = arith.constant 0 : index
    %8 = vector.load %arg6[%c0_6, %c0_7] : memref<128x128xf32, #tpu.memory_space<vmem>>, vector<128x128xf32>
    tpu.vector_store %arg6[%c0_6, %c0_7], %7 {strides = array<i32>} : memref<128x128xf32, #tpu.memory_space<vmem>>, vector<128x128xf32>,
    %c0_i32_8 = arith.constant 0 : i32
    %9 = arith.cmpi eq, %arg1, %c0_i32_8 : i32
    %10 = arith.extui %9 : i1 to i32
    %c0_i32_9 = arith.constant 0 : i32
    %11 = arith.cmpi ne, %10, %c0_i32_9 : i32
    scf.if %11 {
      %c0_10 = arith.constant 0 : index
      %c0_11 = arith.constant 0 : index
      %12 = vector.load %arg6[%c0_10, %c0_11] : memref<128x128xf32, #tpu.memory_space<vmem>>, vector<128x128xf32>
      %cst_12 = arith.constant dense<0.000000e+00> : vector<128xf32>
      %13 = vector.multi_reduction <add>, %12, %cst_12 [0] : vector<128x128xf32> to vector<128xf32>
      %14 = vector.shape_cast %13 : vector<128xf32> to vector<1x128xf32>
      %15 = vector.shape_cast %14 : vector<1x128xf32> to vector<1x1x128xf32>
      %c0_13 = arith.constant 0 : index
      %c0_14 = arith.constant 0 : index
      %c0_15 = arith.constant 0 : index
      %16 = vector.load %arg4[%c0_13, %c0_14, %c0_15] : memref<1x1x128xf32, #tpu.memory_space<vmem>>, vector<1x1x128xf32>
      tpu.vector_store %arg4[%c0_13, %c0_14, %c0_15], %15 {strides = array<i32>} : memref<1x1x128xf32, #tpu.memory_space<vmem>>, vector<1x1x128xf32>,
      %17 = arith.mulf %12, %12 : vector<128x128xf32>
      %cst_16 = arith.constant dense<0.000000e+00> : vector<128xf32>
      %18 = vector.multi_reduction <add>, %17, %cst_16 [0] : vector<128x128xf32> to vector<128xf32>
      %19 = vector.shape_cast %18 : vector<128xf32> to vector<1x128xf32>
      %20 = vector.shape_cast %19 : vector<1x128xf32> to vector<1x1x128xf32>
      %c0_17 = arith.constant 0 : index
      %c0_18 = arith.constant 0 : index
      %c0_19 = arith.constant 0 : index
      %21 = vector.load %arg5[%c0_17, %c0_18, %c0_19] : memref<1x1x128xf32, #tpu.memory_space<vmem>>, vector<1x1x128xf32>
      tpu.vector_store %arg5[%c0_17, %c0_18, %c0_19], %20 {strides = array<i32>} : memref<1x1x128xf32, #tpu.memory_space<vmem>>, vector<1x1x128xf32>,
    } else {
    }
    return
  }
  func.func @transform_0(%arg0: i32, %arg1: i32) -> (i32, i32) {
    %c0_i32 = arith.constant 0 : i32
    return %arg0, %arg1 : i32, i32
  }
  func.func @transform_1(%arg0: i32, %arg1: i32) -> (i32, i32) {
    %c0_i32 = arith.constant 0 : i32
    %c0_i32_0 = arith.constant 0 : i32
    return %arg1, %c0_i32 : i32, i32
  }
  func.func @transform_2(%arg0: i32, %arg1: i32) -> (i32, i32, i32) {
    %c0_i32 = arith.constant 0 : i32
    %c0_i32_0 = arith.constant 0 : i32
    %c0_i32_1 = arith.constant 0 : i32
    return %arg0, %c0_i32, %c0_i32_0 : i32, i32, i32
  }
  func.func @transform_3(%arg0: i32, %arg1: i32) -> (i32, i32, i32) {
    %c0_i32 = arith.constant 0 : i32
    %c0_i32_0 = arith.constant 0 : i32
    %c0_i32_1 = arith.constant 0 : i32
    return %arg0, %c0_i32, %c0_i32_0 : i32, i32, i32
  }
}

</mosaic_0001>

<llo_original>
// kernel: down_forward.2
$region0: #{down_forward.2}
  #allocation0 [shape = 'u32[]', space=smem, size = 0x4, offset = 0x4, fixed_abs, tag = 'smem constant byte address 0x4 - core index']
  #allocation1 [shape = 'u32[144,128]{1,0:T(1,128)}', space=vmem, size = 0x12000, scoped, tag = 'internal scratch']
  #allocation2 [shape = 'f32[128,128]{1,0:T(8,128)}', space=vmem, size = 0x10000, scoped, tag = 'scratch operand']
  %s0 = inlined_call_operand.vmem [shape: f32[128,40], index: 0, kind: input, shape index: {}]
  %s1 = inlined_call_operand.vmem [shape: f32[40,128], index: 1, kind: input, shape index: {}]
  %s2 = inlined_call_operand.vmem [shape: f32[1,1,128], index: 2, kind: output, shape index: {0}]
  %s3 = inlined_call_operand.vmem [shape: f32[1,1,128], index: 3, kind: output, shape index: {1}]
  %4 = xla_tuple %s2, %s3
  %s5 = sld [smem:[#allocation0]]
  $region34: #{down_forward.2} parent=0
    _
  %s7 = ssub.s32 1, %s5
  %s8 = scalar_select 0, %s7, %s5
  // Predicated region
  $region2: #{down_forward.2} parent=0 // pred_check
    _
  $region3: #{down_forward.2} parent=0 // pred_check_branch
    %10 = sbr.rel (0) target = $region5
  $region4: #{down_forward.2} parent=0 // pred_region
    _
  $region5: #{down_forward.2} parent=0 // pred_fallthru
    _
  // Predicated region
  $region6: #{down_forward.2} parent=0 // pred_check
    _
  $region7: #{down_forward.2} parent=0 // pred_check_branch
    %12 = sbr.rel (0) target = $region9
  $region8: #{down_forward.2} parent=0 // pred_region
    _
  $region9: #{down_forward.2} parent=0 // pred_fallthru
    _
  %p13 = scmp.eq.s32.totalorder 0, 0
  // Predicated region
  $region10: #{down_forward.2} parent=0 // pred_check
    %p14 = pneg %p13
  $region11: #{down_forward.2} parent=0 // pred_check_branch
    %16 = sbr.rel (%p14) target = $region13
  $region12: #{down_forward.2} parent=0 // pred_region
    %17 = vst [vmem:[#allocation2] sm:$0xff] 0.0
    %18 = vst [vmem:[#allocation2 + $0x8] sm:$0xff] 0.0
    %19 = vst [vmem:[#allocation2 + $0x10] sm:$0xff] 0.0
    %20 = vst [vmem:[#allocation2 + $0x18] sm:$0xff] 0.0
    %21 = vst [vmem:[#allocation2 + $0x20] sm:$0xff] 0.0
    %22 = vst [vmem:[#allocation2 + $0x28] sm:$0xff] 0.0
    %23 = vst [vmem:[#allocation2 + $0x30] sm:$0xff] 0.0
    %24 = vst [vmem:[#allocation2 + $0x38] sm:$0xff] 0.0
    %25 = vst [vmem:[#allocation2 + $0x40] sm:$0xff] 0.0
    %26 = vst [vmem:[#allocation2 + $0x48] sm:$0xff] 0.0
    %27 = vst [vmem:[#allocation2 + $0x50] sm:$0xff] 0.0
    %28 = vst [vmem:[#allocation2 + $0x58] sm:$0xff] 0.0
    %29 = vst [vmem:[#allocation2 + $0x60] sm:$0xff] 0.0
    %30 = vst [vmem:[#allocation2 + $0x68] sm:$0xff] 0.0
    %31 = vst [vmem:[#allocation2 + $0x70] sm:$0xff] 0.0
    %32 = vst [vmem:[#allocation2 + $0x78] sm:$0xff] 0.0
  $region13: #{down_forward.2} parent=0 // pred_fallthru
    _
  %v33 = vld [vmem:[#allocation2] sm:$0xff]
  %v34 = vld [vmem:[#allocation2 + $0x8] sm:$0xff]
  %v35 = vld [vmem:[#allocation2 + $0x10] sm:$0xff]
  %v36 = vld [vmem:[#allocation2 + $0x18] sm:$0xff]
  %v37 = vld [vmem:[#allocation2 + $0x20] sm:$0xff]
  %v38 = vld [vmem:[#allocation2 + $0x28] sm:$0xff]
  %v39 = vld [vmem:[#allocation2 + $0x30] sm:$0xff]
  %v40 = vld [vmem:[#allocation2 + $0x38] sm:$0xff]
  %v41 = vld [vmem:[#allocation2 + $0x40] sm:$0xff]
  %v42 = vld [vmem:[#allocation2 + $0x48] sm:$0xff]
  %v43 = vld [vmem:[#allocation2 + $0x50] sm:$0xff]
  %v44 = vld [vmem:[#allocation2 + $0x58] sm:$0xff]
  %v45 = vld [vmem:[#allocation2 + $0x60] sm:$0xff]
  %v46 = vld [vmem:[#allocation2 + $0x68] sm:$0xff]
  %v47 = vld [vmem:[#allocation2 + $0x70] sm:$0xff]
  %v48 = vld [vmem:[#allocation2 + $0x78] sm:$0xff]
  %v49 = vld [vmem:[%s0] sm:$0xff]
  %v50 = vld [vmem:[%s0 + $0x8] sm:$0xff]
  %v51 = vld [vmem:[%s0 + $0x10] sm:$0xff]
  %v52 = vld [vmem:[%s0 + $0x18] sm:$0xff]
  %v53 = vld [vmem:[%s0 + $0x20] sm:$0xff]
  %v54 = vld [vmem:[%s0 + $0x28] sm:$0xff]
  %v55 = vld [vmem:[%s0 + $0x30] sm:$0xff]
  %v56 = vld [vmem:[%s0 + $0x38] sm:$0xff]
  %v57 = vld [vmem:[%s0 + $0x40] sm:$0xff]
  %v58 = vld [vmem:[%s0 + $0x48] sm:$0xff]
  %v59 = vld [vmem:[%s0 + $0x50] sm:$0xff]
  %v60 = vld [vmem:[%s0 + $0x58] sm:$0xff]
  %v61 = vld [vmem:[%s0 + $0x60] sm:$0xff]
  %v62 = vld [vmem:[%s0 + $0x68] sm:$0xff]
  %v63 = vld [vmem:[%s0 + $0x70] sm:$0xff]
  %v64 = vld [vmem:[%s0 + $0x78] sm:$0xff]
  %v65 = vld [vmem:[%s1] sm:$0xff]
  %v66 = vld [vmem:[%s1 + $0x8] sm:$0xff]
  %v67 = vld [vmem:[%s1 + $0x10] sm:$0xff]
  %v68 = vld [vmem:[%s1 + $0x18] sm:$0xff]
  %v69 = vld [vmem:[%s1 + $0x20] sm:$0xff]
  %vm70 = vcmask 326656
  %v72 = vsel %vm70, %v49, 0
  %v75 = vsel %vm70, %v50, 0
  %v78 = vsel %vm70, %v51, 0
  %v81 = vsel %vm70, %v52, 0
  %v84 = vsel %vm70, %v53, 0
  %v87 = vsel %vm70, %v54, 0
  %v90 = vsel %vm70, %v55, 0
  %v93 = vsel %vm70, %v56, 0
  %v96 = vsel %vm70, %v57, 0
  %v99 = vsel %vm70, %v58, 0
  %v102 = vsel %vm70, %v59, 0
  %v105 = vsel %vm70, %v60, 0
  %v108 = vsel %vm70, %v61, 0
  %v111 = vsel %vm70, %v62, 0
  %v114 = vsel %vm70, %v63, 0
  %v117 = vsel %vm70, %v64, 0
  %119 = vmatprep.subr.mxu0 0.0
  %120 = vmatpush1.msra.mxu0 %v65
  %121 = vmatprep.subr.mxu0 0.0
  %122 = vmatpush1.msra.mxu0 %v66
  %123 = vmatprep.subr.mxu0 0.0
  %124 = vmatpush1.msra.mxu0 %v67
  %125 = vmatprep.subr.mxu0 0.0
  %126 = vmatpush1.msra.mxu0 %v68
  %127 = vmatprep.subr.mxu0 0.0
  %128 = vmatpush1.msra.mxu0 %v69
  %129 = vmatprep.subr.mxu0 0.0
  %130 = vmatpush1.msra.mxu0 0.0
  %131 = vmatprep.subr.mxu0 0.0
  %132 = vmatpush1.msra.mxu0 0.0
  %133 = vmatprep.subr.mxu0 0.0
  %134 = vmatpush1.msra.mxu0 0.0
  %135 = vmatprep.subr.mxu0 0.0
  %136 = vmatpush1.msra.mxu0 0.0
  %137 = vmatprep.subr.mxu0 0.0
  %138 = vmatpush1.msra.mxu0 0.0
  %139 = vmatprep.subr.mxu0 0.0
  %140 = vmatpush1.msra.mxu0 0.0
  %141 = vmatprep.subr.mxu0 0.0
  %142 = vmatpush1.msra.mxu0 0.0
  %143 = vmatprep.subr.mxu0 0.0
  %144 = vmatpush1.msra.mxu0 0.0
  %145 = vmatprep.subr.mxu0 0.0
  %146 = vmatpush1.msra.mxu0 0.0
  %147 = vmatprep.subr.mxu0 0.0
  %148 = vmatpush1.msra.mxu0 0.0
  %149 = vmatprep.subr.mxu0 0.0
  %150 = vmatpush1.msra.mxu0 0.0
  %151 = vmatprep.subr.mxu0 0.0
  %152 = vmatpush1.msra.mxu0 0.0
  %153 = vmatprep.subr.mxu0 0.0
  %154 = vmatpush1.msra.mxu0 0.0
  %155 = vmatprep.subr.mxu0 0.0
  %156 = vmatpush1.msra.mxu0 0.0
  %157 = vmatprep.subr.mxu0 0.0
  %158 = vmatpush1.msra.mxu0 0.0
  %159 = vmatprep.subr.mxu0 0.0
  %160 = vmatpush1.msra.mxu0 0.0
  %161 = vmatprep.subr.mxu0 0.0
  %162 = vmatpush1.msra.mxu0 0.0
  %163 = vmatprep.subr.mxu0 0.0
  %164 = vmatpush1.msra.mxu0 0.0
  %165 = vmatprep.subr.mxu0 0.0
  %166 = vmatpush1.msra.mxu0 0.0
  %167 = vmatprep.subr.mxu0 0.0
  %168 = vmatpush1.msra.mxu0 0.0
  %169 = vmatprep.subr.mxu0 0.0
  %170 = vmatpush1.msra.mxu0 0.0
  %171 = vmatprep.subr.mxu0 0.0
  %172 = vmatpush1.msra.mxu0 0.0
  %173 = vmatprep.subr.mxu0 0.0
  %174 = vmatpush1.msra.mxu0 0.0
  %175 = vmatprep.subr.mxu0 0.0
  %176 = vmatpush1.msra.mxu0 0.0
  %177 = vmatprep.subr.mxu0 0.0
  %178 = vmatpush1.msra.mxu0 0.0
  %179 = vmatprep.subr.mxu0 0.0
  %180 = vmatpush1.msra.mxu0 0.0
  %181 = vmatprep.subr.mxu0 0.0
  %182 = vmatpush1.msra.mxu0 0.0
  %183 = vmatprep.mubr.f32.mxu0 0.0
  %184 = vmatmul.mubr.f32.gmra.mrb[0].mxu0 %v72
  %v185 = vpop.f32.mrb[0].mxu0
  %v186 = vadd.f32 0.0, %v185
  %v187 = vpop.f32.mrb[0].mxu0
  %188 = vmatprep.mubr.f32.mxu0 0.0
  %189 = vmatmul.mubr.f32.gmra.mrb[0].mxu0 %v75
  %v190 = vpop.f32.mrb[0].mxu0
  %v191 = vadd.f32 0.0, %v190
  %v192 = vpop.f32.mrb[0].mxu0
  %193 = vmatprep.mubr.f32.mxu0 0.0
  %194 = vmatmul.mubr.f32.gmra.mrb[0].mxu0 %v78
  %v195 = vpop.f32.mrb[0].mxu0
  %v196 = vadd.f32 0.0, %v195
  %v197 = vpop.f32.mrb[0].mxu0
  %198 = vmatprep.mubr.f32.mxu0 0.0
  %199 = vmatmul.mubr.f32.gmra.mrb[0].mxu0 %v81
  %v200 = vpop.f32.mrb[0].mxu0
  %v201 = vadd.f32 0.0, %v200
  %v202 = vpop.f32.mrb[0].mxu0
  %203 = vmatprep.mubr.f32.mxu0 0.0
  %204 = vmatmul.mubr.f32.gmra.mrb[0].mxu0 %v84
  %v205 = vpop.f32.mrb[0].mxu0
  %v206 = vadd.f32 0.0, %v205
  %v207 = vpop.f32.mrb[0].mxu0
  %208 = vmatprep.mubr.f32.mxu0 0.0
  %209 = vmatmul.mubr.f32.gmra.mrb[0].mxu0 %v87
  %v210 = vpop.f32.mrb[0].mxu0
  %v211 = vadd.f32 0.0, %v210
  %v212 = vpop.f32.mrb[0].mxu0
  %213 = vmatprep.mubr.f32.mxu0 0.0
  %214 = vmatmul.mubr.f32.gmra.mrb[0].mxu0 %v90
  %v215 = vpop.f32.mrb[0].mxu0
  %v216 = vadd.f32 0.0, %v215
  %v217 = vpop.f32.mrb[0].mxu0
  %218 = vmatprep.mubr.f32.mxu0 0.0
  %219 = vmatmul.mubr.f32.gmra.mrb[0].mxu0 %v93
  %v220 = vpop.f32.mrb[0].mxu0
  %v221 = vadd.f32 0.0, %v220
  %v222 = vpop.f32.mrb[0].mxu0
  %223 = vmatprep.mubr.f32.mxu0 0.0
  %224 = vmatmul.mubr.f32.gmra.mrb[0].mxu0 %v96
  %v225 = vpop.f32.mrb[0].mxu0
  %v226 = vadd.f32 0.0, %v225
  %v227 = vpop.f32.mrb[0].mxu0
  %228 = vmatprep.mubr.f32.mxu0 0.0
  %229 = vmatmul.mubr.f32.gmra.mrb[0].mxu0 %v99
  %v230 = vpop.f32.mrb[0].mxu0
  %v231 = vadd.f32 0.0, %v230
  %v232 = vpop.f32.mrb[0].mxu0
  %233 = vmatprep.mubr.f32.mxu0 0.0
  %234 = vmatmul.mubr.f32.gmra.mrb[0].mxu0 %v102
  %v235 = vpop.f32.mrb[0].mxu0
  %v236 = vadd.f32 0.0, %v235
  %v237 = vpop.f32.mrb[0].mxu0
  %238 = vmatprep.mubr.f32.mxu0 0.0
  %239 = vmatmul.mubr.f32.gmra.mrb[0].mxu0 %v105
  %v240 = vpop.f32.mrb[0].mxu0
  %v241 = vadd.f32 0.0, %v240
  %v242 = vpop.f32.mrb[0].mxu0
  %243 = vmatprep.mubr.f32.mxu0 0.0
  %244 = vmatmul.mubr.f32.gmra.mrb[0].mxu0 %v108
  %v245 = vpop.f32.mrb[0].mxu0
  %v246 = vadd.f32 0.0, %v245
  %v247 = vpop.f32.mrb[0].mxu0
  %248 = vmatprep.mubr.f32.mxu0 0.0
  %249 = vmatmul.mubr.f32.gmra.mrb[0].mxu0 %v111
  %v250 = vpop.f32.mrb[0].mxu0
  %v251 = vadd.f32 0.0, %v250
  %v252 = vpop.f32.mrb[0].mxu0
  %253 = vmatprep.mubr.f32.mxu0 0.0
  %254 = vmatmul.mubr.f32.gmra.mrb[0].mxu0 %v114
  %v255 = vpop.f32.mrb[0].mxu0
  %v256 = vadd.f32 0.0, %v255
  %v257 = vpop.f32.mrb[0].mxu0
  %258 = vmatprep.mubr.f32.mxu0 0.0
  %259 = vmatmul.mubr.f32.gmra.mrb[0].mxu0 %v117
  %v260 = vpop.f32.mrb[0].mxu0
  %v261 = vadd.f32 0.0, %v260
  %v262 = vpop.f32.mrb[0].mxu0
  %263 = vdwg.mxu0
  %v264 = vadd.f32 %v33, %v186
  %v265 = vadd.f32 %v34, %v191
  %v266 = vadd.f32 %v35, %v196
  %v267 = vadd.f32 %v36, %v201
  %v268 = vadd.f32 %v37, %v206
  %v269 = vadd.f32 %v38, %v211
  %v270 = vadd.f32 %v39, %v216
  %v271 = vadd.f32 %v40, %v221
  %v272 = vadd.f32 %v41, %v226
  %v273 = vadd.f32 %v42, %v231
  %v274 = vadd.f32 %v43, %v236
  %v275 = vadd.f32 %v44, %v241
  %v276 = vadd.f32 %v45, %v246
  %v277 = vadd.f32 %v46, %v251
  %v278 = vadd.f32 %v47, %v256
  %v279 = vadd.f32 %v48, %v261
  %280 = vst [vmem:[#allocation2] sm:$0xff] %v264
  %281 = vst [vmem:[#allocation2 + $0x8] sm:$0xff] %v265
  %282 = vst [vmem:[#allocation2 + $0x10] sm:$0xff] %v266
  %283 = vst [vmem:[#allocation2 + $0x18] sm:$0xff] %v267
  %284 = vst [vmem:[#allocation2 + $0x20] sm:$0xff] %v268
  %285 = vst [vmem:[#allocation2 + $0x28] sm:$0xff] %v269
  %286 = vst [vmem:[#allocation2 + $0x30] sm:$0xff] %v270
  %287 = vst [vmem:[#allocation2 + $0x38] sm:$0xff] %v271
  %288 = vst [vmem:[#allocation2 + $0x40] sm:$0xff] %v272
  %289 = vst [vmem:[#allocation2 + $0x48] sm:$0xff] %v273
  %290 = vst [vmem:[#allocation2 + $0x50] sm:$0xff] %v274
  %291 = vst [vmem:[#allocation2 + $0x58] sm:$0xff] %v275
  %292 = vst [vmem:[#allocation2 + $0x60] sm:$0xff] %v276
  %293 = vst [vmem:[#allocation2 + $0x68] sm:$0xff] %v277
  %294 = vst [vmem:[#allocation2 + $0x70] sm:$0xff] %v278
  %295 = vst [vmem:[#allocation2 + $0x78] sm:$0xff] %v279
  // Predicated region
  $region14: #{down_forward.2} parent=0 // pred_check
    %p296 = pneg %p13
  $region15: #{down_forward.2} parent=0 // pred_check_branch
    %298 = sbr.rel (%p296) target = $region17
  $region16: #{down_forward.2} parent=0 // pred_region
    %v299 = vld [vmem:[#allocation2] sm:$0xff]
    %v300 = vld [vmem:[#allocation2 + $0x8] sm:$0xff]
    %v301 = vld [vmem:[#allocation2 + $0x10] sm:$0xff]
    %v302 = vld [vmem:[#allocation2 + $0x18] sm:$0xff]
    %v303 = vld [vmem:[#allocation2 + $0x20] sm:$0xff]
    %v304 = vld [vmem:[#allocation2 + $0x28] sm:$0xff]
    %v305 = vld [vmem:[#allocation2 + $0x30] sm:$0xff]
    %v306 = vld [vmem:[#allocation2 + $0x38] sm:$0xff]
    %v307 = vld [vmem:[#allocation2 + $0x40] sm:$0xff]
    %v308 = vld [vmem:[#allocation2 + $0x48] sm:$0xff]
    %v309 = vld [vmem:[#allocation2 + $0x50] sm:$0xff]
    %v310 = vld [vmem:[#allocation2 + $0x58] sm:$0xff]
    %v311 = vld [vmem:[#allocation2 + $0x60] sm:$0xff]
    %v312 = vld [vmem:[#allocation2 + $0x68] sm:$0xff]
    %v313 = vld [vmem:[#allocation2 + $0x70] sm:$0xff]
    %v314 = vld [vmem:[#allocation2 + $0x78] sm:$0xff]
    %v315 = vadd.f32 %v299, %v300
    %v316 = vadd.f32 %v315, %v301
    %v317 = vadd.f32 %v316, %v302
    %v318 = vadd.f32 %v317, %v303
    %v319 = vadd.f32 %v318, %v304
    %v320 = vadd.f32 %v319, %v305
    %v321 = vadd.f32 %v320, %v306
    %v322 = vadd.f32 %v321, %v307
    %v323 = vadd.f32 %v322, %v308
    %v324 = vadd.f32 %v323, %v309
    %v325 = vadd.f32 %v324, %v310
    %v326 = vadd.f32 %v325, %v311
    %v327 = vadd.f32 %v326, %v312
    %v328 = vadd.f32 %v327, %v313
    %v329 = vadd.f32 %v328, %v314
    %v330 = vrot.slane %v329, 4
    %v331 = vadd.f32 %v329, %v330
    %v332 = vrot.slane %v331, 2
    %v333 = vadd.f32 %v331, %v332
    %v334 = vrot.slane %v333, 1
    %v335 = vadd.f32 %v333, %v334
    %336 = vst [vmem:[%s2] sm:$0x1] %v335
    %v337 = vmul.f32 %v299, %v299
    %v338 = vmul.f32 %v300, %v300
    %v339 = vmul.f32 %v301, %v301
    %v340 = vmul.f32 %v302, %v302
    %v341 = vmul.f32 %v303, %v303
    %v342 = vmul.f32 %v304, %v304
    %v343 = vmul.f32 %v305, %v305
    %v344 = vmul.f32 %v306, %v306
    %v345 = vmul.f32 %v307, %v307
    %v346 = vmul.f32 %v308, %v308
    %v347 = vmul.f32 %v309, %v309
    %v348 = vmul.f32 %v310, %v310
    %v349 = vmul.f32 %v311, %v311
    %v350 = vmul.f32 %v312, %v312
    %v351 = vmul.f32 %v313, %v313
    %v352 = vmul.f32 %v314, %v314
    %v353 = vadd.f32 %v337, %v338
    %v354 = vadd.f32 %v353, %v339
    %v355 = vadd.f32 %v354, %v340
    %v356 = vadd.f32 %v355, %v341
    %v357 = vadd.f32 %v356, %v342
    %v358 = vadd.f32 %v357, %v343
    %v359 = vadd.f32 %v358, %v344
    %v360 = vadd.f32 %v359, %v345
    %v361 = vadd.f32 %v360, %v346
    %v362 = vadd.f32 %v361, %v347
    %v363 = vadd.f32 %v362, %v348
    %v364 = vadd.f32 %v363, %v349
    %v365 = vadd.f32 %v364, %v350
    %v366 = vadd.f32 %v365, %v351
    %v367 = vadd.f32 %v366, %v352
    %v368 = vrot.slane %v367, 4
    %v369 = vadd.f32 %v367, %v368
    %v370 = vrot.slane %v369, 2
    %v371 = vadd.f32 %v369, %v370
    %v372 = vrot.slane %v371, 1
    %v373 = vadd.f32 %v371, %v372
    %374 = vst [vmem:[%s3] sm:$0x1] %v373
  $region17: #{down_forward.2} parent=0 // pred_fallthru
    _
  // Predicated region
  $region18: #{down_forward.2} parent=0 // pred_check
    _
  $region19: #{down_forward.2} parent=0 // pred_check_branch
    %376 = sbr.rel (0) target = $region21
  $region20: #{down_forward.2} parent=0 // pred_region
    _
  $region21: #{down_forward.2} parent=0 // pred_fallthru
    _
  // Predicated region
  $region22: #{down_forward.2} parent=0 // pred_check
    _
  $region23: #{down_forward.2} parent=0 // pred_check_branch
    %378 = sbr.rel (0) target = $region25
  $region24: #{down_forward.2} parent=0 // pred_region
    _
  $region25: #{down_forward.2} parent=0 // pred_fallthru
    _
  // Predicated region
  $region26: #{down_forward.2} parent=0 // pred_check
    _
  $region27: #{down_forward.2} parent=0 // pred_check_branch
    %380 = sbr.rel (0) target = $region29
  $region28: #{down_forward.2} parent=0 // pred_region
    _
  $region29: #{down_forward.2} parent=0 // pred_fallthru
    _
  // Predicated region
  $region30: #{down_forward.2} parent=0 // pred_check
    _
  $region31: #{down_forward.2} parent=0 // pred_check_branch
    %382 = sbr.rel (0) target = $region33
  $region32: #{down_forward.2} parent=0 // pred_region
    _
  $region33: #{down_forward.2} parent=0 // pred_fallthru
    _

// kernel: down_forward.3
$region0: #{down_forward.3}
  #allocation0 [shape = 'u32[]', space=smem, size = 0x4, offset = 0x4, fixed_abs, tag = 'smem constant byte address 0x4 - core index']
  #allocation1 [shape = 'u32[144,128]{1,0:T(1,128)}', space=vmem, size = 0x12000, scoped, tag = 'internal scratch']
  #allocation2 [shape = 'f32[128,128]{1,0:T(8,128)}', space=vmem, size = 0x10000, scoped, tag = 'scratch operand']
  %s0 = inlined_call_operand.vmem [shape: f32[128,40], index: 0, kind: input, shape index: {}]
  %s1 = inlined_call_operand.vmem [shape: f32[40,128], index: 1, kind: input, shape index: {}]
  %s2 = inlined_call_operand.vmem [shape: f32[1,128], index: 2, kind: input, shape index: {}]
  %s3 = inlined_call_operand.vmem [shape: f32[1,128], index: 3, kind: input, shape index: {}]
  %s4 = inlined_call_operand.vmem [shape: f32[128,8], index: 4, kind: output, shape index: {}]
  %s5 = sld [smem:[#allocation0]]
  $region34: #{down_forward.3} parent=0
    _
  %s7 = ssub.s32 1, %s5
  %s8 = scalar_select 0, %s7, %s5
  // Predicated region
  $region2: #{down_forward.3} parent=0 // pred_check
    _
  $region3: #{down_forward.3} parent=0 // pred_check_branch
    %10 = sbr.rel (0) target = $region5
  $region4: #{down_forward.3} parent=0 // pred_region
    _
  $region5: #{down_forward.3} parent=0 // pred_fallthru
    _
  // Predicated region
  $region6: #{down_forward.3} parent=0 // pred_check
    _
  $region7: #{down_forward.3} parent=0 // pred_check_branch
    %12 = sbr.rel (0) target = $region9
  $region8: #{down_forward.3} parent=0 // pred_region
    _
  $region9: #{down_forward.3} parent=0 // pred_fallthru
    _
  // Predicated region
  $region10: #{down_forward.3} parent=0 // pred_check
    _
  $region11: #{down_forward.3} parent=0 // pred_check_branch
    %14 = sbr.rel (0) target = $region13
  $region12: #{down_forward.3} parent=0 // pred_region
    _
  $region13: #{down_forward.3} parent=0 // pred_fallthru
    _
  // Predicated region
  $region14: #{down_forward.3} parent=0 // pred_check
    _
  $region15: #{down_forward.3} parent=0 // pred_check_branch
    %16 = sbr.rel (0) target = $region17
  $region16: #{down_forward.3} parent=0 // pred_region
    _
  $region17: #{down_forward.3} parent=0 // pred_fallthru
    _
  %p17 = scmp.eq.s32.totalorder 0, 0
  // Predicated region
  $region18: #{down_forward.3} parent=0 // pred_check
    %p18 = pneg %p17
  $region19: #{down_forward.3} parent=0 // pred_check_branch
    %20 = sbr.rel (%p18) target = $region21
  $region20: #{down_forward.3} parent=0 // pred_region
    %21 = vst [vmem:[#allocation2] sm:$0xff] 0.0
    %22 = vst [vmem:[#allocation2 + $0x8] sm:$0xff] 0.0
    %23 = vst [vmem:[#allocation2 + $0x10] sm:$0xff] 0.0
    %24 = vst [vmem:[#allocation2 + $0x18] sm:$0xff] 0.0
    %25 = vst [vmem:[#allocation2 + $0x20] sm:$0xff] 0.0
    %26 = vst [vmem:[#allocation2 + $0x28] sm:$0xff] 0.0
    %27 = vst [vmem:[#allocation2 + $0x30] sm:$0xff] 0.0
    %28 = vst [vmem:[#allocation2 + $0x38] sm:$0xff] 0.0
    %29 = vst [vmem:[#allocation2 + $0x40] sm:$0xff] 0.0
    %30 = vst [vmem:[#allocation2 + $0x48] sm:$0xff] 0.0
    %31 = vst [vmem:[#allocation2 + $0x50] sm:$0xff] 0.0
    %32 = vst [vmem:[#allocation2 + $0x58] sm:$0xff] 0.0
    %33 = vst [vmem:[#allocation2 + $0x60] sm:$0xff] 0.0
    %34 = vst [vmem:[#allocation2 + $0x68] sm:$0xff] 0.0
    %35 = vst [vmem:[#allocation2 + $0x70] sm:$0xff] 0.0
    %36 = vst [vmem:[#allocation2 + $0x78] sm:$0xff] 0.0
  $region21: #{down_forward.3} parent=0 // pred_fallthru
    _
  %v37 = vld [vmem:[#allocation2] sm:$0xff]
  %v38 = vld [vmem:[#allocation2 + $0x8] sm:$0xff]
  %v39 = vld [vmem:[#allocation2 + $0x10] sm:$0xff]
  %v40 = vld [vmem:[#allocation2 + $0x18] sm:$0xff]
  %v41 = vld [vmem:[#allocation2 + $0x20] sm:$0xff]
  %v42 = vld [vmem:[#allocation2 + $0x28] sm:$0xff]
  %v43 = vld [vmem:[#allocation2 + $0x30] sm:$0xff]
  %v44 = vld [vmem:[#allocation2 + $0x38] sm:$0xff]
  %v45 = vld [vmem:[#allocation2 + $0x40] sm:$0xff]
  %v46 = vld [vmem:[#allocation2 + $0x48] sm:$0xff]
  %v47 = vld [vmem:[#allocation2 + $0x50] sm:$0xff]
  %v48 = vld [vmem:[#allocation2 + $0x58] sm:$0xff]
  %v49 = vld [vmem:[#allocation2 + $0x60] sm:$0xff]
  %v50 = vld [vmem:[#allocation2 + $0x68] sm:$0xff]
  %v51 = vld [vmem:[#allocation2 + $0x70] sm:$0xff]
  %v52 = vld [vmem:[#allocation2 + $0x78] sm:$0xff]
  %v53 = vld [vmem:[%s0] sm:$0xff]
  %v54 = vld [vmem:[%s0 + $0x8] sm:$0xff]
  %v55 = vld [vmem:[%s0 + $0x10] sm:$0xff]
  %v56 = vld [vmem:[%s0 + $0x18] sm:$0xff]
  %v57 = vld [vmem:[%s0 + $0x20] sm:$0xff]
  %v58 = vld [vmem:[%s0 + $0x28] sm:$0xff]
  %v59 = vld [vmem:[%s0 + $0x30] sm:$0xff]
  %v60 = vld [vmem:[%s0 + $0x38] sm:$0xff]
  %v61 = vld [vmem:[%s0 + $0x40] sm:$0xff]
  %v62 = vld [vmem:[%s0 + $0x48] sm:$0xff]
  %v63 = vld [vmem:[%s0 + $0x50] sm:$0xff]
  %v64 = vld [vmem:[%s0 + $0x58] sm:$0xff]
  %v65 = vld [vmem:[%s0 + $0x60] sm:$0xff]
  %v66 = vld [vmem:[%s0 + $0x68] sm:$0xff]
  %v67 = vld [vmem:[%s0 + $0x70] sm:$0xff]
  %v68 = vld [vmem:[%s0 + $0x78] sm:$0xff]
  %v69 = vld [vmem:[%s1] sm:$0xff]
  %v70 = vld [vmem:[%s1 + $0x8] sm:$0xff]
  %v71 = vld [vmem:[%s1 + $0x10] sm:$0xff]
  %v72 = vld [vmem:[%s1 + $0x18] sm:$0xff]
  %v73 = vld [vmem:[%s1 + $0x20] sm:$0xff]
  %vm74 = vcmask 326656
  %v76 = vsel %vm74, %v53, 0
  %v79 = vsel %vm74, %v54, 0
  %v82 = vsel %vm74, %v55, 0
  %v85 = vsel %vm74, %v56, 0
  %v88 = vsel %vm74, %v57, 0
  %v91 = vsel %vm74, %v58, 0
  %v94 = vsel %vm74, %v59, 0
  %v97 = vsel %vm74, %v60, 0
  %v100 = vsel %vm74, %v61, 0
  %v103 = vsel %vm74, %v62, 0
  %v106 = vsel %vm74, %v63, 0
  %v109 = vsel %vm74, %v64, 0
  %v112 = vsel %vm74, %v65, 0
  %v115 = vsel %vm74, %v66, 0
  %v118 = vsel %vm74, %v67, 0
  %v121 = vsel %vm74, %v68, 0
  %123 = vmatprep.subr.mxu0 0.0
  %124 = vmatpush1.msra.mxu0 %v69
  %125 = vmatprep.subr.mxu0 0.0
  %126 = vmatpush1.msra.mxu0 %v70
  %127 = vmatprep.subr.mxu0 0.0
  %128 = vmatpush1.msra.mxu0 %v71
  %129 = vmatprep.subr.mxu0 0.0
  %130 = vmatpush1.msra.mxu0 %v72
  %131 = vmatprep.subr.mxu0 0.0
  %132 = vmatpush1.msra.mxu0 %v73
  %133 = vmatprep.subr.mxu0 0.0
  %134 = vmatpush1.msra.mxu0 0.0
  %135 = vmatprep.subr.mxu0 0.0
  %136 = vmatpush1.msra.mxu0 0.0
  %137 = vmatprep.subr.mxu0 0.0
  %138 = vmatpush1.msra.mxu0 0.0
  %139 = vmatprep.subr.mxu0 0.0
  %140 = vmatpush1.msra.mxu0 0.0
  %141 = vmatprep.subr.mxu0 0.0
  %142 = vmatpush1.msra.mxu0 0.0
  %143 = vmatprep.subr.mxu0 0.0
  %144 = vmatpush1.msra.mxu0 0.0
  %145 = vmatprep.subr.mxu0 0.0
  %146 = vmatpush1.msra.mxu0 0.0
  %147 = vmatprep.subr.mxu0 0.0
  %148 = vmatpush1.msra.mxu0 0.0
  %149 = vmatprep.subr.mxu0 0.0
  %150 = vmatpush1.msra.mxu0 0.0
  %151 = vmatprep.subr.mxu0 0.0
  %152 = vmatpush1.msra.mxu0 0.0
  %153 = vmatprep.subr.mxu0 0.0
  %154 = vmatpush1.msra.mxu0 0.0
  %155 = vmatprep.subr.mxu0 0.0
  %156 = vmatpush1.msra.mxu0 0.0
  %157 = vmatprep.subr.mxu0 0.0
  %158 = vmatpush1.msra.mxu0 0.0
  %159 = vmatprep.subr.mxu0 0.0
  %160 = vmatpush1.msra.mxu0 0.0
  %161 = vmatprep.subr.mxu0 0.0
  %162 = vmatpush1.msra.mxu0 0.0
  %163 = vmatprep.subr.mxu0 0.0
  %164 = vmatpush1.msra.mxu0 0.0
  %165 = vmatprep.subr.mxu0 0.0
  %166 = vmatpush1.msra.mxu0 0.0
  %167 = vmatprep.subr.mxu0 0.0
  %168 = vmatpush1.msra.mxu0 0.0
  %169 = vmatprep.subr.mxu0 0.0
  %170 = vmatpush1.msra.mxu0 0.0
  %171 = vmatprep.subr.mxu0 0.0
  %172 = vmatpush1.msra.mxu0 0.0
  %173 = vmatprep.subr.mxu0 0.0
  %174 = vmatpush1.msra.mxu0 0.0
  %175 = vmatprep.subr.mxu0 0.0
  %176 = vmatpush1.msra.mxu0 0.0
  %177 = vmatprep.subr.mxu0 0.0
  %178 = vmatpush1.msra.mxu0 0.0
  %179 = vmatprep.subr.mxu0 0.0
  %180 = vmatpush1.msra.mxu0 0.0
  %181 = vmatprep.subr.mxu0 0.0
  %182 = vmatpush1.msra.mxu0 0.0
  %183 = vmatprep.subr.mxu0 0.0
  %184 = vmatpush1.msra.mxu0 0.0
  %185 = vmatprep.subr.mxu0 0.0
  %186 = vmatpush1.msra.mxu0 0.0
  %187 = vmatprep.mubr.f32.mxu0 0.0
  %188 = vmatmul.mubr.f32.gmra.mrb[0].mxu0 %v76
  %v189 = vpop.f32.mrb[0].mxu0
  %v190 = vadd.f32 0.0, %v189
  %v191 = vpop.f32.mrb[0].mxu0
  %192 = vmatprep.mubr.f32.mxu0 0.0
  %193 = vmatmul.mubr.f32.gmra.mrb[0].mxu0 %v79
  %v194 = vpop.f32.mrb[0].mxu0
  %v195 = vadd.f32 0.0, %v194
  %v196 = vpop.f32.mrb[0].mxu0
  %197 = vmatprep.mubr.f32.mxu0 0.0
  %198 = vmatmul.mubr.f32.gmra.mrb[0].mxu0 %v82
  %v199 = vpop.f32.mrb[0].mxu0
  %v200 = vadd.f32 0.0, %v199
  %v201 = vpop.f32.mrb[0].mxu0
  %202 = vmatprep.mubr.f32.mxu0 0.0
  %203 = vmatmul.mubr.f32.gmra.mrb[0].mxu0 %v85
  %v204 = vpop.f32.mrb[0].mxu0
  %v205 = vadd.f32 0.0, %v204
  %v206 = vpop.f32.mrb[0].mxu0
  %207 = vmatprep.mubr.f32.mxu0 0.0
  %208 = vmatmul.mubr.f32.gmra.mrb[0].mxu0 %v88
  %v209 = vpop.f32.mrb[0].mxu0
  %v210 = vadd.f32 0.0, %v209
  %v211 = vpop.f32.mrb[0].mxu0
  %212 = vmatprep.mubr.f32.mxu0 0.0
  %213 = vmatmul.mubr.f32.gmra.mrb[0].mxu0 %v91
  %v214 = vpop.f32.mrb[0].mxu0
  %v215 = vadd.f32 0.0, %v214
  %v216 = vpop.f32.mrb[0].mxu0
  %217 = vmatprep.mubr.f32.mxu0 0.0
  %218 = vmatmul.mubr.f32.gmra.mrb[0].mxu0 %v94
  %v219 = vpop.f32.mrb[0].mxu0
  %v220 = vadd.f32 0.0, %v219
  %v221 = vpop.f32.mrb[0].mxu0
  %222 = vmatprep.mubr.f32.mxu0 0.0
  %223 = vmatmul.mubr.f32.gmra.mrb[0].mxu0 %v97
  %v224 = vpop.f32.mrb[0].mxu0
  %v225 = vadd.f32 0.0, %v224
  %v226 = vpop.f32.mrb[0].mxu0
  %227 = vmatprep.mubr.f32.mxu0 0.0
  %228 = vmatmul.mubr.f32.gmra.mrb[0].mxu0 %v100
  %v229 = vpop.f32.mrb[0].mxu0
  %v230 = vadd.f32 0.0, %v229
  %v231 = vpop.f32.mrb[0].mxu0
  %232 = vmatprep.mubr.f32.mxu0 0.0
  %233 = vmatmul.mubr.f32.gmra.mrb[0].mxu0 %v103
  %v234 = vpop.f32.mrb[0].mxu0
  %v235 = vadd.f32 0.0, %v234
  %v236 = vpop.f32.mrb[0].mxu0
  %237 = vmatprep.mubr.f32.mxu0 0.0
  %238 = vmatmul.mubr.f32.gmra.mrb[0].mxu0 %v106
  %v239 = vpop.f32.mrb[0].mxu0
  %v240 = vadd.f32 0.0, %v239
  %v241 = vpop.f32.mrb[0].mxu0
  %242 = vmatprep.mubr.f32.mxu0 0.0
  %243 = vmatmul.mubr.f32.gmra.mrb[0].mxu0 %v109
  %v244 = vpop.f32.mrb[0].mxu0
  %v245 = vadd.f32 0.0, %v244
  %v246 = vpop.f32.mrb[0].mxu0
  %247 = vmatprep.mubr.f32.mxu0 0.0
  %248 = vmatmul.mubr.f32.gmra.mrb[0].mxu0 %v112
  %v249 = vpop.f32.mrb[0].mxu0
  %v250 = vadd.f32 0.0, %v249
  %v251 = vpop.f32.mrb[0].mxu0
  %252 = vmatprep.mubr.f32.mxu0 0.0
  %253 = vmatmul.mubr.f32.gmra.mrb[0].mxu0 %v115
  %v254 = vpop.f32.mrb[0].mxu0
  %v255 = vadd.f32 0.0, %v254
  %v256 = vpop.f32.mrb[0].mxu0
  %257 = vmatprep.mubr.f32.mxu0 0.0
  %258 = vmatmul.mubr.f32.gmra.mrb[0].mxu0 %v118
  %v259 = vpop.f32.mrb[0].mxu0
  %v260 = vadd.f32 0.0, %v259
  %v261 = vpop.f32.mrb[0].mxu0
  %262 = vmatprep.mubr.f32.mxu0 0.0
  %263 = vmatmul.mubr.f32.gmra.mrb[0].mxu0 %v121
  %v264 = vpop.f32.mrb[0].mxu0
  %v265 = vadd.f32 0.0, %v264
  %v266 = vpop.f32.mrb[0].mxu0
  %267 = vdwg.mxu0
  %v268 = vadd.f32 %v37, %v190
  %v269 = vadd.f32 %v38, %v195
  %v270 = vadd.f32 %v39, %v200
  %v271 = vadd.f32 %v40, %v205
  %v272 = vadd.f32 %v41, %v210
  %v273 = vadd.f32 %v42, %v215
  %v274 = vadd.f32 %v43, %v220
  %v275 = vadd.f32 %v44, %v225
  %v276 = vadd.f32 %v45, %v230
  %v277 = vadd.f32 %v46, %v235
  %v278 = vadd.f32 %v47, %v240
  %v279 = vadd.f32 %v48, %v245
  %v280 = vadd.f32 %v49, %v250
  %v281 = vadd.f32 %v50, %v255
  %v282 = vadd.f32 %v51, %v260
  %v283 = vadd.f32 %v52, %v265
  %284 = vst [vmem:[#allocation2] sm:$0xff] %v268
  %285 = vst [vmem:[#allocation2 + $0x8] sm:$0xff] %v269
  %286 = vst [vmem:[#allocation2 + $0x10] sm:$0xff] %v270
  %287 = vst [vmem:[#allocation2 + $0x18] sm:$0xff] %v271
  %288 = vst [vmem:[#allocation2 + $0x20] sm:$0xff] %v272
  %289 = vst [vmem:[#allocation2 + $0x28] sm:$0xff] %v273
  %290 = vst [vmem:[#allocation2 + $0x30] sm:$0xff] %v274
  %291 = vst [vmem:[#allocation2 + $0x38] sm:$0xff] %v275
  %292 = vst [vmem:[#allocation2 + $0x40] sm:$0xff] %v276
  %293 = vst [vmem:[#allocation2 + $0x48] sm:$0xff] %v277
  %294 = vst [vmem:[#allocation2 + $0x50] sm:$0xff] %v278
  %295 = vst [vmem:[#allocation2 + $0x58] sm:$0xff] %v279
  %296 = vst [vmem:[#allocation2 + $0x60] sm:$0xff] %v280
  %297 = vst [vmem:[#allocation2 + $0x68] sm:$0xff] %v281
  %298 = vst [vmem:[#allocation2 + $0x70] sm:$0xff] %v282
  %299 = vst [vmem:[#allocation2 + $0x78] sm:$0xff] %v283
  // Predicated region
  $region22: #{down_forward.3} parent=0 // pred_check
    %p300 = pneg %p17
  $region23: #{down_forward.3} parent=0 // pred_check_branch
    %302 = sbr.rel (%p300) target = $region25
  $region24: #{down_forward.3} parent=0 // pred_region
    %v303 = vld [vmem:[#allocation2] sm:$0xff]
    %v304 = vld [vmem:[#allocation2 + $0x8] sm:$0xff]
    %v305 = vld [vmem:[#allocation2 + $0x10] sm:$0xff]
    %v306 = vld [vmem:[#allocation2 + $0x18] sm:$0xff]
    %v307 = vld [vmem:[#allocation2 + $0x20] sm:$0xff]
    %v308 = vld [vmem:[#allocation2 + $0x28] sm:$0xff]
    %v309 = vld [vmem:[#allocation2 + $0x30] sm:$0xff]
    %v310 = vld [vmem:[#allocation2 + $0x38] sm:$0xff]
    %v311 = vld [vmem:[#allocation2 + $0x40] sm:$0xff]
    %v312 = vld [vmem:[#allocation2 + $0x48] sm:$0xff]
    %v313 = vld [vmem:[#allocation2 + $0x50] sm:$0xff]
    %v314 = vld [vmem:[#allocation2 + $0x58] sm:$0xff]
    %v315 = vld [vmem:[#allocation2 + $0x60] sm:$0xff]
    %v316 = vld [vmem:[#allocation2 + $0x68] sm:$0xff]
    %v317 = vld [vmem:[#allocation2 + $0x70] sm:$0xff]
    %v318 = vld [vmem:[#allocation2 + $0x78] sm:$0xff]
    %v319 = vld [vmem:[%s2] sm:$0x1]
    %v321 = vlaneseq
    %v322 = vshrl.u32 %v321, 7
    %v323 = vsub.s32 0, %v322
    %v324 = vrot.slane %v319, %v323
    %v326 = vmul.f32 %v303, %v324
    %v327 = vmul.f32 %v304, %v324
    %v328 = vmul.f32 %v305, %v324
    %v329 = vmul.f32 %v306, %v324
    %v330 = vmul.f32 %v307, %v324
    %v331 = vmul.f32 %v308, %v324
    %v332 = vmul.f32 %v309, %v324
    %v333 = vmul.f32 %v310, %v324
    %v334 = vmul.f32 %v311, %v324
    %v335 = vmul.f32 %v312, %v324
    %v336 = vmul.f32 %v313, %v324
    %v337 = vmul.f32 %v314, %v324
    %v338 = vmul.f32 %v315, %v324
    %v339 = vmul.f32 %v316, %v324
    %v340 = vmul.f32 %v317, %v324
    %v341 = vmul.f32 %v318, %v324
    %v342 = vld [vmem:[%s3] sm:$0x1]
    %v344 = vlaneseq
    %v345 = vshrl.u32 %v344, 7
    %v346 = vsub.s32 0, %v345
    %v347 = vrot.slane %v342, %v346
    %v349 = vadd.f32 %v326, %v347
    %v350 = vadd.f32 %v327, %v347
    %v351 = vadd.f32 %v328, %v347
    %v352 = vadd.f32 %v329, %v347
    %v353 = vadd.f32 %v330, %v347
    %v354 = vadd.f32 %v331, %v347
    %v355 = vadd.f32 %v332, %v347
    %v356 = vadd.f32 %v333, %v347
    %v357 = vadd.f32 %v334, %v347
    %v358 = vadd.f32 %v335, %v347
    %v359 = vadd.f32 %v336, %v347
    %v360 = vadd.f32 %v337, %v347
    %v361 = vadd.f32 %v338, %v347
    %v362 = vadd.f32 %v339, %v347
    %v363 = vadd.f32 %v340, %v347
    %v364 = vadd.f32 %v341, %v347
    %vm365 = vcmp.ge.f32.partialorder %v349, 0.0
    %vm366 = vcmp.ge.f32.partialorder %v350, 0.0
    %vm367 = vcmp.ge.f32.partialorder %v351, 0.0
    %vm368 = vcmp.ge.f32.partialorder %v352, 0.0
    %vm369 = vcmp.ge.f32.partialorder %v353, 0.0
    %vm370 = vcmp.ge.f32.partialorder %v354, 0.0
    %vm371 = vcmp.ge.f32.partialorder %v355, 0.0
    %vm372 = vcmp.ge.f32.partialorder %v356, 0.0
    %vm373 = vcmp.ge.f32.partialorder %v357, 0.0
    %vm374 = vcmp.ge.f32.partialorder %v358, 0.0
    %vm375 = vcmp.ge.f32.partialorder %v359, 0.0
    %vm376 = vcmp.ge.f32.partialorder %v360, 0.0
    %vm377 = vcmp.ge.f32.partialorder %v361, 0.0
    %vm378 = vcmp.ge.f32.partialorder %v362, 0.0
    %vm379 = vcmp.ge.f32.partialorder %v363, 0.0
    %vm380 = vcmp.ge.f32.partialorder %v364, 0.0
    %v381 = vmul.f32 %v349, 0.2
    %v382 = vmul.f32 %v350, 0.2
    %v383 = vmul.f32 %v351, 0.2
    %v384 = vmul.f32 %v352, 0.2
    %v385 = vmul.f32 %v353, 0.2
    %v386 = vmul.f32 %v354, 0.2
    %v387 = vmul.f32 %v355, 0.2
    %v388 = vmul.f32 %v356, 0.2
    %v389 = vmul.f32 %v357, 0.2
    %v390 = vmul.f32 %v358, 0.2
    %v391 = vmul.f32 %v359, 0.2
    %v392 = vmul.f32 %v360, 0.2
    %v393 = vmul.f32 %v361, 0.2
    %v394 = vmul.f32 %v362, 0.2
    %v395 = vmul.f32 %v363, 0.2
    %v396 = vmul.f32 %v364, 0.2
    %v397 = vsel %vm365, %v349, %v381
    %v398 = vsel %vm366, %v350, %v382
    %v399 = vsel %vm367, %v351, %v383
    %v400 = vsel %vm368, %v352, %v384
    %v401 = vsel %vm369, %v353, %v385
    %v402 = vsel %vm370, %v354, %v386
    %v403 = vsel %vm371, %v355, %v387
    %v404 = vsel %vm372, %v356, %v388
    %v405 = vsel %vm373, %v357, %v389
    %v406 = vsel %vm374, %v358, %v390
    %v407 = vsel %vm375, %v359, %v391
    %v408 = vsel %vm376, %v360, %v392
    %v409 = vsel %vm377, %v361, %v393
    %v410 = vsel %vm378, %v362, %v394
    %v411 = vsel %vm379, %v363, %v395
    %v412 = vsel %vm380, %v364, %v396
    %vm413 = vcmask 64512
    %414 = vst.msk [vmem:[%s4] sm:$0xff] %vm413, %v397
    %415 = vst.msk [vmem:[%s4 + $0x8] sm:$0xff] %vm413, %v398
    %416 = vst.msk [vmem:[%s4 + $0x10] sm:$0xff] %vm413, %v399
    %417 = vst.msk [vmem:[%s4 + $0x18] sm:$0xff] %vm413, %v400
    %418 = vst.msk [vmem:[%s4 + $0x20] sm:$0xff] %vm413, %v401
    %419 = vst.msk [vmem:[%s4 + $0x28] sm:$0xff] %vm413, %v402
    %420 = vst.msk [vmem:[%s4 + $0x30] sm:$0xff] %vm413, %v403
    %421 = vst.msk [vmem:[%s4 + $0x38] sm:$0xff] %vm413, %v404
    %422 = vst.msk [vmem:[%s4 + $0x40] sm:$0xff] %vm413, %v405
    %423 = vst.msk [vmem:[%s4 + $0x48] sm:$0xff] %vm413, %v406
    %424 = vst.msk [vmem:[%s4 + $0x50] sm:$0xff] %vm413, %v407
    %425 = vst.msk [vmem:[%s4 + $0x58] sm:$0xff] %vm413, %v408
    %426 = vst.msk [vmem:[%s4 + $0x60] sm:$0xff] %vm413, %v409
    %427 = vst.msk [vmem:[%s4 + $0x68] sm:$0xff] %vm413, %v410
    %428 = vst.msk [vmem:[%s4 + $0x70] sm:$0xff] %vm413, %v411
    %429 = vst.msk [vmem:[%s4 + $0x78] sm:$0xff] %vm413, %v412
  $region25: #{down_forward.3} parent=0 // pred_fallthru
    _
  // Predicated region
  $region26: #{down_forward.3} parent=0 // pred_check
    _
  $region27: #{down_forward.3} parent=0 // pred_check_branch
    %431 = sbr.rel (0) target = $region29
  $region28: #{down_forward.3} parent=0 // pred_region
    _
  $region29: #{down_forward.3} parent=0 // pred_fallthru
    _
  // Predicated region
  $region30: #{down_forward.3} parent=0 // pred_check
    _
  $region31: #{down_forward.3} parent=0 // pred_check_branch
    %433 = sbr.rel (0) target = $region33
  $region32: #{down_forward.3} parent=0 // pred_region
    _
  $region33: #{down_forward.3} parent=0 // pred_fallthru
    _

</llo_original>
